<compile_context>
chip_gen: v7x
topology: tpu7x:2x2x1
jax: 0.10.0
libtpu: 0.0.40
codegen_flags: <defaults>
</compile_context>

<pallas_src>
import functools

import jax
import jax.numpy as jnp
from jax.experimental import pallas as pl
from jax.experimental.pallas import tpu as pltpu

IN_FEATURES = 4
HIDDEN = 10
LANES = 128
TILE_MAX = 8 * 1024   # rows per grid step (lane axis); v5e-VMEM and v7x 2-TC friendly
MIN_SPLIT = 1024      # don't shard tiny batches across grid steps


def _cdiv(a, b):
    return (a + b - 1) // b


def _round_up(x, m):
    return _cdiv(x, m) * m


def _pick_compute_dtype():
    """bf16 VALU path on v6e/v7x; f32 elsewhere (v5e has no bf16 VALUs)."""
    try:
        kind = jax.devices()[0].device_kind.lower()
    except Exception:
        return jnp.float32
    if ("v6" in kind) or ("v7" in kind) or ("tpu7" in kind):
        return jnp.bfloat16
    return jnp.float32


_COMPUTE_DTYPE = _pick_compute_dtype()
_IS_BF16 = jnp.dtype(_COMPUTE_DTYPE) == jnp.dtype(jnp.bfloat16)


def _mlp_kernel(xT_ref, w1_ref, b1_ref, w2_ref, b2_ref, o_ref, *, approx_recip):
    xT = xT_ref[...]          # (4, TB)  batch on the lane axis, compute dtype
    w1 = w1_ref[...]          # (10, 4)  PyTorch (out_features, in_features)
    b1 = b1_ref[...]          # (10, 1)
    w2 = w2_ref[...]          # (10, 1)  == PyTorch fc2.weight.T
    b2 = b2_ref[0, 0]         # f32 scalar from SMEM

    # fc1: h[o, :] = sum_k w1[o, k] * x[k, :] + b1[o] -- K=4 unrolled VPU
    # broadcast-FMAs; a K=4 contraction would waste an entire MXU pass.
    # TODO(synk): verify in the Mosaic dump that these broadcasts don't
    # materialize (10, TB) temporaries; if they do, switch the xT rows to
    # stride-0 sublane-broadcast loads (xT_ref[pl.ds(k, HIDDEN, stride=0), :]).
    h = b1 + w1[:, 0:1] * xT[0:1, :]
    for k in range(1, IN_FEATURES):
        h = h + w1[:, k:k + 1] * xT[k:k + 1, :]
    h = jnp.maximum(h, 0.0)   # ReLU (compute dtype)

    # fc2: y = sum_o w2[o] * h[o, :] + b2 -- products in compute dtype, the
    # sublane reduction (XLU slot) accumulated in f32.
    y = jnp.sum((w2 * h).astype(jnp.float32), axis=0, keepdims=True) + b2  # (1, TB)

    # Sigmoid as exp + reciprocal: both land on the EUP slot (idle here)
    # instead of a multi-op VALU divide.
    o_ref[...] = pl.reciprocal(1.0 + jnp.exp(-y), approx=approx_recip).astype(o_ref.dtype)


def binary_classifier_forward(x, w1, b1, w2, b2):
    """x: (B, 4); w1: (10, 4); b1: (10,); w2: (1, 10); b2: (1,) -> (B, 1)."""
    B = x.shape[0]
    cd = _COMPUTE_DTYPE

    # Tile sizing: bound pad waste (Bp - B <~ 128 * num_tiles) and give the
    # ("parallel",) grid axis >= 4 steps once the batch is big enough so both
    # v7x TensorCores get work; 8K-row tiles keep the per-step VMEM footprint
    # far under v5e's 16 MiB default scoped limit with double buffering.
    num_tiles = max(_cdiv(B, TILE_MAX), min(4, _cdiv(B, MIN_SPLIT)), 1)
    tb = _round_up(_cdiv(B, num_tiles), LANES)
    Bp = num_tiles * tb

    # Layout plumbing (cast first so any non-fused copy moves half the bytes on
    # the bf16 path).  allow_input_fusion below lets XLA fuse this pad+transpose
    # into the pallas_call operand instead of materializing (4, Bp) in HBM.
    xT = jnp.pad(x.astype(cd), ((0, Bp - B), (0, 0))).T        # (4, Bp)
    w1c = w1.astype(cd)                                        # (10, 4)
    b1c = b1.reshape(HIDDEN, 1).astype(cd)                     # (10, 1)
    w2c = w2.reshape(1, HIDDEN).T.astype(cd)                   # (10, 1)
    b2s = b2.reshape(1, 1).astype(jnp.float32)                 # (1, 1) SMEM scalar

    kernel = functools.partial(_mlp_kernel, approx_recip=_IS_BF16)
    x_bytes = jnp.dtype(cd).itemsize

    out = pl.pallas_call(
        kernel,
        out_shape=jax.ShapeDtypeStruct((1, Bp), jnp.float32),
        grid=(num_tiles,),
        in_specs=[
            pl.BlockSpec((IN_FEATURES, tb), lambda i: (0, i)),       # x^T tile
            pl.BlockSpec((HIDDEN, IN_FEATURES), lambda i: (0, 0)),   # resident
            pl.BlockSpec((HIDDEN, 1), lambda i: (0, 0)),             # resident
            pl.BlockSpec((HIDDEN, 1), lambda i: (0, 0)),             # resident
            pl.BlockSpec(memory_space=pltpu.MemorySpace.SMEM),       # b2 scalar
        ],
        out_specs=pl.BlockSpec((1, tb), lambda i: (0, i)),
        compiler_params=pltpu.CompilerParams(
            dimension_semantics=("parallel",),                       # 2 TCs on v7x
            allow_input_fusion=[True, False, False, False, False],   # fuse pad+T of x
        ),
        cost_estimate=pl.CostEstimate(
            flops=100 * Bp,
            transcendentals=2 * Bp,
            bytes_accessed=(IN_FEATURES * x_bytes + 4) * Bp,
        ),
    )(xT, w1c, b1c, w2c, b2s)

    # Drop batch padding, restore (B, 1) and follow the input dtype (PyTorch
    # dtype semantics).  If a consumer can take (1, B) f32 directly, drop this.
    return out[0, :B].reshape(B, 1).astype(x.dtype)


binary_classifier_forward_jit = jax.jit(binary_classifier_forward)


def init_params(key):
    """PyTorch nn.Linear default init: U[-1/sqrt(fan_in), 1/sqrt(fan_in)]."""
    k1, k2, k3, k4 = jax.random.split(key, 4)
    bound1 = 1.0 / jnp.sqrt(4.0)
    bound2 = 1.0 / jnp.sqrt(10.0)
    w1 = jax.random.uniform(k1, (HIDDEN, IN_FEATURES), jnp.float32, -bound1, bound1)
    b1 = jax.random.uniform(k2, (HIDDEN,), jnp.float32, -bound1, bound1)
    w2 = jax.random.uniform(k3, (1, HIDDEN), jnp.float32, -bound2, bound2)
    b2 = jax.random.uniform(k4, (1,), jnp.float32, -bound2, bound2)
    return w1, b1, w2, b2


def reference_forward(x, w1, b1, w2, b2):
    h = jnp.maximum(x @ w1.T + b1, 0.0)
    return jax.nn.sigmoid(h @ w2.T + b2)


if __name__ == "__main__":
    key = jax.random.PRNGKey(0)
    kx, kp = jax.random.split(key)

    # Note: at tiny batches the pallas_call overhead dominates ~100 FLOPs of
    # compute; the kernel pays off once B is large.  Correctness is checked
    # here at a small, deterministic shape.
    batch = 8
    x = jax.random.normal(kx, (batch, IN_FEATURES), dtype=jnp.float32)
    w1, b1, w2, b2 = init_params(kp)

    out = binary_classifier_forward_jit(x, w1, b1, w2, b2)
    out = jax.block_until_ready(out)

    ref = reference_forward(x, w1, b1, w2, b2)
    tol = 2e-2 if _IS_BF16 else 1e-5   # bf16 compute path needs a looser check
    assert out.shape == (batch, 1)
    assert out.dtype == x.dtype
    assert jnp.allclose(out, ref, atol=tol, rtol=tol), "mismatch vs reference"

    print("KERNEL_OK")
</pallas_src>

<mosaic_0001>
module attributes {stable_mosaic.version = 11 : i64} {
  func.func @_mlp_kernel(%arg0: i32, %arg1: memref<4x128xf32, #tpu.memory_space<vmem>>, %arg2: memref<10x4xf32, #tpu.memory_space<vmem>>, %arg3: memref<10x1xf32, #tpu.memory_space<vmem>>, %arg4: memref<10x1xf32, #tpu.memory_space<vmem>>, %arg5: memref<1x1xf32, #tpu.memory_space<smem>>, %arg6: memref<1x128xf32, #tpu.memory_space<vmem>>) attributes {dimension_semantics = [#tpu.dimension_semantics<parallel>], iteration_bounds = array<i64: 1>, scalar_prefetch = 0 : i64, scratch_operands = 0 : i64, tpu.core_type = #tpu.core_type<tc>, window_params = [{transform_indices = @transform_0, window_bounds = array<i64: 4, 128>}, {pipeline_mode = #tpu.pipeline_mode<synchronous>, transform_indices = @transform_1, window_bounds = array<i64: 10, 4>}, {pipeline_mode = #tpu.pipeline_mode<synchronous>, transform_indices = @transform_2, window_bounds = array<i64: 10, 1>}, {pipeline_mode = #tpu.pipeline_mode<synchronous>, transform_indices = @transform_3, window_bounds = array<i64: 10, 1>}, {transform_indices = @transform_4, window_bounds = array<i64: 1, 1>}, {transform_indices = @transform_5, window_bounds = array<i64: 1, 128>}]} {
    %c0 = arith.constant 0 : index
    %c0_0 = arith.constant 0 : index
    %0 = vector.load %arg1[%c0, %c0_0] : memref<4x128xf32, #tpu.memory_space<vmem>>, vector<4x128xf32>
    %c0_1 = arith.constant 0 : index
    %c0_2 = arith.constant 0 : index
    %1 = vector.load %arg2[%c0_1, %c0_2] : memref<10x4xf32, #tpu.memory_space<vmem>>, vector<10x4xf32>
    %c0_3 = arith.constant 0 : index
    %c0_4 = arith.constant 0 : index
    %2 = vector.load %arg3[%c0_3, %c0_4] : memref<10x1xf32, #tpu.memory_space<vmem>>, vector<10x1xf32>
    %c0_5 = arith.constant 0 : index
    %c0_6 = arith.constant 0 : index
    %3 = vector.load %arg4[%c0_5, %c0_6] : memref<10x1xf32, #tpu.memory_space<vmem>>, vector<10x1xf32>
    %c0_7 = arith.constant 0 : index
    %c0_8 = arith.constant 0 : index
    %4 = memref.load %arg5[%c0_7, %c0_8] : memref<1x1xf32, #tpu.memory_space<smem>>
    %5 = vector.extract_strided_slice %1 {offsets = [0, 0], sizes = [10, 1], strides = [1, 1]} : vector<10x4xf32> to vector<10x1xf32>
    %6 = vector.extract_strided_slice %0 {offsets = [0, 0], sizes = [1, 128], strides = [1, 1]} : vector<4x128xf32> to vector<1x128xf32>
    %7 = vector.broadcast %5 : vector<10x1xf32> to vector<10x128xf32>
    %8 = vector.broadcast %6 : vector<1x128xf32> to vector<10x128xf32>
    %9 = arith.mulf %7, %8 : vector<10x128xf32>
    %10 = vector.broadcast %2 : vector<10x1xf32> to vector<10x128xf32>
    %11 = arith.addf %10, %9 : vector<10x128xf32>
    %12 = vector.extract_strided_slice %1 {offsets = [0, 1], sizes = [10, 1], strides = [1, 1]} : vector<10x4xf32> to vector<10x1xf32>
    %13 = vector.extract_strided_slice %0 {offsets = [1, 0], sizes = [1, 128], strides = [1, 1]} : vector<4x128xf32> to vector<1x128xf32>
    %14 = vector.broadcast %12 : vector<10x1xf32> to vector<10x128xf32>
    %15 = vector.broadcast %13 : vector<1x128xf32> to vector<10x128xf32>
    %16 = arith.mulf %14, %15 : vector<10x128xf32>
    %17 = arith.addf %11, %16 : vector<10x128xf32>
    %18 = vector.extract_strided_slice %1 {offsets = [0, 2], sizes = [10, 1], strides = [1, 1]} : vector<10x4xf32> to vector<10x1xf32>
    %19 = vector.extract_strided_slice %0 {offsets = [2, 0], sizes = [1, 128], strides = [1, 1]} : vector<4x128xf32> to vector<1x128xf32>
    %20 = vector.broadcast %18 : vector<10x1xf32> to vector<10x128xf32>
    %21 = vector.broadcast %19 : vector<1x128xf32> to vector<10x128xf32>
    %22 = arith.mulf %20, %21 : vector<10x128xf32>
    %23 = arith.addf %17, %22 : vector<10x128xf32>
    %24 = vector.extract_strided_slice %1 {offsets = [0, 3], sizes = [10, 1], strides = [1, 1]} : vector<10x4xf32> to vector<10x1xf32>
    %25 = vector.extract_strided_slice %0 {offsets = [3, 0], sizes = [1, 128], strides = [1, 1]} : vector<4x128xf32> to vector<1x128xf32>
    %26 = vector.broadcast %24 : vector<10x1xf32> to vector<10x128xf32>
    %27 = vector.broadcast %25 : vector<1x128xf32> to vector<10x128xf32>
    %28 = arith.mulf %26, %27 : vector<10x128xf32>
    %29 = arith.addf %23, %28 : vector<10x128xf32>
    %cst = arith.constant 0.000000e+00 : f32
    %30 = vector.broadcast %cst : f32 to vector<10x128xf32>
    %31 = arith.maximumf %29, %30 : vector<10x128xf32>
    %32 = vector.broadcast %3 : vector<10x1xf32> to vector<10x128xf32>
    %33 = arith.mulf %32, %31 : vector<10x128xf32>
    %cst_9 = arith.constant dense<0.000000e+00> : vector<128xf32>
    %34 = vector.multi_reduction <add>, %33, %cst_9 [0] : vector<10x128xf32> to vector<128xf32>
    %35 = vector.shape_cast %34 : vector<128xf32> to vector<1x128xf32>
    %36 = vector.broadcast %4 : f32 to vector<1x128xf32>
    %37 = arith.addf %35, %36 : vector<1x128xf32>
    %cst_10 = arith.constant 0.000000e+00 : f32
    %38 = vector.broadcast %cst_10 : f32 to vector<1x128xf32>
    %39 = arith.subf %38, %37 : vector<1x128xf32>
    %40 = math.exp %39 : vector<1x128xf32>
    %cst_11 = arith.constant 1.000000e+00 : f32
    %41 = vector.broadcast %cst_11 : f32 to vector<1x128xf32>
    %42 = arith.addf %41, %40 : vector<1x128xf32>
    %43 = tpu.reciprocal %42 : vector<1x128xf32> -> vector<1x128xf32>
    %c0_12 = arith.constant 0 : index
    %c0_13 = arith.constant 0 : index
    %44 = vector.load %arg6[%c0_12, %c0_13] : memref<1x128xf32, #tpu.memory_space<vmem>>, vector<1x128xf32>
    tpu.vector_store %arg6[%c0_12, %c0_13], %43 {strides = array<i32>} : memref<1x128xf32, #tpu.memory_space<vmem>>, vector<1x128xf32>,
    return
  }
  func.func @transform_0(%arg0: i32) -> (i32, i32) {
    %c0_i32 = arith.constant 0 : i32
    %c0_i32_0 = arith.constant 0 : i32
    return %c0_i32, %arg0 : i32, i32
  }
  func.func @transform_1(%arg0: i32) -> (i32, i32) {
    %c0_i32 = arith.constant 0 : i32
    %c0_i32_0 = arith.constant 0 : i32
    %c0_i32_1 = arith.constant 0 : i32
    return %c0_i32, %c0_i32_0 : i32, i32
  }
  func.func @transform_2(%arg0: i32) -> (i32, i32) {
    %c0_i32 = arith.constant 0 : i32
    %c0_i32_0 = arith.constant 0 : i32
    %c0_i32_1 = arith.constant 0 : i32
    return %c0_i32, %c0_i32_0 : i32, i32
  }
  func.func @transform_3(%arg0: i32) -> (i32, i32) {
    %c0_i32 = arith.constant 0 : i32
    %c0_i32_0 = arith.constant 0 : i32
    %c0_i32_1 = arith.constant 0 : i32
    return %c0_i32, %c0_i32_0 : i32, i32
  }
  func.func @transform_4(%arg0: i32) -> (i32, i32) {
    %c0_i32 = arith.constant 0 : i32
    %c0_i32_0 = arith.constant 0 : i32
    %c0_i32_1 = arith.constant 0 : i32
    return %c0_i32, %c0_i32_0 : i32, i32
  }
  func.func @transform_5(%arg0: i32) -> (i32, i32) {
    %c0_i32 = arith.constant 0 : i32
    %c0_i32_0 = arith.constant 0 : i32
    return %c0_i32, %arg0 : i32, i32
  }
}

</mosaic_0001>

<llo_original>
// kernel: binary_classifier_forward.2
$region0: #{binary_classifier_forward.2}
  #allocation0 [shape = 'u32[]', space=smem, size = 0x4, offset = 0x4, fixed_abs, tag = 'smem constant byte address 0x4 - core index']
  #allocation1 [shape = 'u32[144,128]{1,0:T(1,128)}', space=vmem, size = 0x12000, scoped, tag = 'internal scratch']
  #allocation2 [shape = 'u32[2048]{0}', space=vmem, size = 0x2000, scoped, tag = 'scoped memory for binary_classifier_forward.2']
  #allocation3 [shape = 'u32[2048]{0}', space=vmem, size = 0x2000, scoped, tag = 'scoped memory for binary_classifier_forward.2']
  #allocation4 [shape = 'u32[2048]{0}', space=vmem, size = 0x2000, scoped, tag = 'scoped memory for binary_classifier_forward.2']
  #allocation5 [shape = 'u32[2048]{0}', space=vmem, size = 0x2000, scoped, tag = 'scoped memory for binary_classifier_forward.2']
  #allocation6 [shape = 'u32[2048]{0}', space=vmem, size = 0x2000, scoped, tag = 'scoped memory for binary_classifier_forward.2']
  #allocation7 [shape = 'f32[1,1]{1,0:T(1,128)S(6)}', space=smem, size = 0x200, scoped, tag = 'scoped memory for binary_classifier_forward.2']
  %s0 = inlined_call_operand.vmem [shape: f32[10,4], index: 0, kind: input, shape index: {}]
  %s1 = inlined_call_operand.vmem [shape: f32[10,1], index: 1, kind: input, shape index: {}]
  %s2 = inlined_call_operand.vmem [shape: f32[10,1], index: 2, kind: input, shape index: {}]
  %s3 = inlined_call_operand.<no memory space> [shape: f32[1,1], index: 3, kind: input, shape index: {}]
  %s4 = inlined_call_operand.vmem [shape: f32[8,4], index: 4, kind: input, shape index: {}]
  %s5 = inlined_call_operand.<no memory space> [shape: f32[], index: 5, kind: input, shape index: {}]
  %s6 = inlined_call_operand.vmem [shape: f32[1,128], index: 6, kind: output, shape index: {}]
  %s7 = sld [smem:[#allocation0]]
  $region30: #{binary_classifier_forward.2} parent=0
    _
  %s9 = ssub.s32 1, %s7
  %s10 = scalar_select 0, %s9, %s7
  %v11 = vstv %s5
  %12 = sst [smem:[#allocation7]] %s3
  $region1: #{binary_classifier_forward.2} parent=0
    #allocation8 [shape = 'u8[2048]{0}', space=vmem, size = 0x800, dematerialized = true, scoped, tag = 'FusionAdapter Buffer %fusion.1 = f32[4,128]{1,0:T(4,128)} fusion(%param_4.2, %param_5), kind=kLoop, calls=%fused_computation.1.clone, metadata={op_name="jit(binary_classifier_forward)/transpose" stack_frame_id=8}']
    // Predicated region
    $region2: #{binary_classifier_forward.2} parent=1 // pred_check
      _
    $region3: #{binary_classifier_forward.2} parent=1 // pred_check_branch
      %14 = sbr.rel (0) target = $region5
    $region4: #{binary_classifier_forward.2} parent=1 // pred_region
      _
    $region5: #{binary_classifier_forward.2} parent=1 // pred_fallthru
      _
    // Predicated region
    $region6: #{binary_classifier_forward.2} parent=1 // pred_check
      _
    $region7: #{binary_classifier_forward.2} parent=1 // pred_check_branch
      %16 = sbr.rel (0) target = $region9
    $region8: #{binary_classifier_forward.2} parent=1 // pred_region
      _
    $region9: #{binary_classifier_forward.2} parent=1 // pred_fallthru
      _
    // Predicated region
    $region10: #{binary_classifier_forward.2} parent=1 // pred_check
      _
    $region11: #{binary_classifier_forward.2} parent=1 // pred_check_branch
      %18 = sbr.rel (0) target = $region13
    $region12: #{binary_classifier_forward.2} parent=1 // pred_region
      _
    $region13: #{binary_classifier_forward.2} parent=1 // pred_fallthru
      _
    // Predicated region
    $region14: #{binary_classifier_forward.2} parent=1 // pred_check
      _
    $region15: #{binary_classifier_forward.2} parent=1 // pred_check_branch
      %20 = sbr.rel (0) target = $region17
    $region16: #{binary_classifier_forward.2} parent=1 // pred_region
      _
    $region17: #{binary_classifier_forward.2} parent=1 // pred_fallthru
      _
    // Predicated region
    $region18: #{binary_classifier_forward.2} parent=1 // pred_check
      _
    $region19: #{binary_classifier_forward.2} parent=1 // pred_check_branch
      %22 = sbr.rel (0) target = $region21
    $region20: #{binary_classifier_forward.2} parent=1 // pred_region
      _
    $region21: #{binary_classifier_forward.2} parent=1 // pred_fallthru
      _
    %v23 = vld [vmem:[%s4] sm:$0xf]
    %v24 = vlaneseq
    %v25 = vshrl.u32 %v24, 7
    %vm27 = vcmp.lt.s32.totalorder %v25, 4
    %v28 = vsel %vm27, %v23, %v11
    %v29 = vlaneseq
    %v30 = vand.u32 %v29, 127
    %vm32 = vcmp.lt.s32.totalorder %v30, 8
    %v33 = vsel %vm32, %v28, %v11
    %35 = vst [vmem:[#allocation8] sm:$0xf] %v33
    %v36 = vld [vmem:[#allocation8] sm:$0xf]
    %v37 = vld [vmem:[%s0] sm:$0xff]
    %v38 = vld [vmem:[%s0 + $0x8] sm:$0x3]
    %v39 = vld [vmem:[%s1] sm:$0xff]
    %v40 = vld [vmem:[%s1 + $0x8] sm:$0x3]
    %v41 = vld [vmem:[%s2] sm:$0xff]
    %v42 = vld [vmem:[%s2 + $0x8] sm:$0x3]
    %s43 = sld [smem:[#allocation7]]
    %45 = vset.pattern.permute.xlu0 0
    %46 = vperm.xlu0 %45, %v37
    %v47 = vpop.permute.xlu0 %46
    %50 = vset.pattern.permute.xlu0 0
    %51 = vperm.xlu0 %50, %v38
    %v52 = vpop.permute.xlu0 %51
    %v54 = vlaneseq
    %v55 = vshrl.u32 %v54, 7
    %v56 = vsub.s32 0, %v55
    %v57 = vrot.slane %v36, %v56
    %v58 = vmul.f32 %v47, %v57
    %v59 = vmul.f32 %v52, %v57
    %61 = vset.pattern.permute.xlu0 0
    %62 = vperm.xlu0 %61, %v39
    %v63 = vpop.permute.xlu0 %62
    %66 = vset.pattern.permute.xlu0 0
    %67 = vperm.xlu0 %66, %v40
    %v68 = vpop.permute.xlu0 %67
    %v70 = vadd.f32 %v63, %v58
    %v71 = vadd.f32 %v68, %v59
    %72 = vset.pattern.permute.xlu0 1
    %73 = vperm.xlu0 %72, %v37
    %v74 = vpop.permute.xlu0 %73
    %76 = vset.pattern.permute.xlu0 1
    %77 = vperm.xlu0 %76, %v38
    %v78 = vpop.permute.xlu0 %77
    %v80 = vlaneseq
    %v81 = vshrl.u32 %v80, 7
    %v82 = vsub.s32 1, %v81
    %v83 = vrot.slane %v36, %v82
    %v84 = vmul.f32 %v74, %v83
    %v85 = vmul.f32 %v78, %v83
    %v86 = vadd.f32 %v70, %v84
    %v87 = vadd.f32 %v71, %v85
    %88 = vset.pattern.permute.xlu0 2
    %89 = vperm.xlu0 %88, %v37
    %v90 = vpop.permute.xlu0 %89
    %92 = vset.pattern.permute.xlu0 2
    %93 = vperm.xlu0 %92, %v38
    %v94 = vpop.permute.xlu0 %93
    %v96 = vlaneseq
    %v97 = vshrl.u32 %v96, 7
    %v98 = vsub.s32 2, %v97
    %v99 = vrot.slane %v36, %v98
    %v100 = vmul.f32 %v90, %v99
    %v101 = vmul.f32 %v94, %v99
    %v102 = vadd.f32 %v86, %v100
    %v103 = vadd.f32 %v87, %v101
    %104 = vset.pattern.permute.xlu0 3
    %105 = vperm.xlu0 %104, %v37
    %v106 = vpop.permute.xlu0 %105
    %108 = vset.pattern.permute.xlu0 3
    %109 = vperm.xlu0 %108, %v38
    %v110 = vpop.permute.xlu0 %109
    %v112 = vlaneseq
    %v113 = vshrl.u32 %v112, 7
    %v114 = vsub.s32 3, %v113
    %v115 = vrot.slane %v36, %v114
    %v116 = vmul.f32 %v106, %v115
    %v117 = vmul.f32 %v110, %v115
    %v118 = vadd.f32 %v102, %v116
    %v119 = vadd.f32 %v103, %v117
    %v120 = vmax.f32 %v118, 0.0
    %v121 = vmax.f32 %v119, 0.0
    %123 = vset.pattern.permute.xlu0 0
    %124 = vperm.xlu0 %123, %v41
    %v125 = vpop.permute.xlu0 %124
    %128 = vset.pattern.permute.xlu0 0
    %129 = vperm.xlu0 %128, %v42
    %v130 = vpop.permute.xlu0 %129
    %v132 = vmul.f32 %v125, %v120
    %v133 = vmul.f32 %v130, %v121
    %vm134 = vcmask 1041408
    %v135 = vsel %vm134, %v133, 0.0
    %v136 = vadd.f32 %v132, %v135
    %v137 = vrot.slane %v136, 4
    %v138 = vadd.f32 %v136, %v137
    %v139 = vrot.slane %v138, 2
    %v140 = vadd.f32 %v138, %v139
    %v141 = vrot.slane %v140, 1
    %v142 = vadd.f32 %v140, %v141
    %v143 = vstv %s43
    %v144 = vadd.f32 %v142, %v143
    %v145 = vsub.f32 0.0, %v144
    %v146 = vmul.f32 %v145, 1.442695
    %v147 = vpow.pop %v146
    %v148 = vadd.f32 %v147, 1.0
    %v149 = vrcp.pop %v148
    %150 = vst [vmem:[%s6] sm:$0x1] %v149
    // Predicated region
    $region22: #{binary_classifier_forward.2} parent=1 // pred_check
      _
    $region23: #{binary_classifier_forward.2} parent=1 // pred_check_branch
      %152 = sbr.rel (0) target = $region25
    $region24: #{binary_classifier_forward.2} parent=1 // pred_region
      _
    $region25: #{binary_classifier_forward.2} parent=1 // pred_fallthru
      _
    // Predicated region
    $region26: #{binary_classifier_forward.2} parent=1 // pred_check
      _
    $region27: #{binary_classifier_forward.2} parent=1 // pred_check_branch
      %154 = sbr.rel (0) target = $region29
    $region28: #{binary_classifier_forward.2} parent=1 // pred_region
      _
    $region29: #{binary_classifier_forward.2} parent=1 // pred_fallthru
      _

</llo_original>
